<compile_context>
chip_gen: v5e
topology: v5e:2x2
jax: 0.10.0
libtpu: 0.0.40
codegen_flags: <defaults>
</compile_context>

<pallas_src>
import functools
import math

import jax
import jax.numpy as jnp
from jax import lax
from jax.experimental import pallas as pl
from jax.experimental.pallas import tpu as pltpu


def _round_up(x, m):
    return ((x + m - 1) // m) * m


# ---------------------------------------------------------------------------
# Kernel 1: node table builder  [ns | vec | MLP(ns) | 0]  (lane-dense 8F out)
# ---------------------------------------------------------------------------
def node_table_kernel(ns_ref, nv_ref, w1_ref, b1_ref, w2_ref, b2_ref, tab_ref):
    ns = ns_ref[...]                                            # [TN, F]  f32
    nv = nv_ref[...]                                            # [TN, 3F] f32
    h = jnp.dot(ns.astype(w1_ref.dtype), w1_ref[...],
                preferred_element_type=jnp.float32) + b1_ref[...]
    h = h * jax.nn.sigmoid(h)                                   # SiLU (f32)
    so = jnp.dot(h.astype(w2_ref.dtype), w2_ref[...],
                 preferred_element_type=jnp.float32) + b2_ref[...]
    # packed, lane-dense (8F = 256 lanes for F=32) single store
    tab_ref[...] = jnp.concatenate([ns, nv, so, jnp.zeros_like(ns)], axis=1)


# ---------------------------------------------------------------------------
# Kernel 2: per-edge filter + gating + segmented scatter-add (edge-tile grid)
# ---------------------------------------------------------------------------
def painn_edge_kernel(esrc_ref, edst_ref,                       # SMEM (prefetch)
                      tab_ref,                                  # [N_pad, 8F] resident
                      eg_ref,                                   # [TE, 8] diff|dist tile
                      freq_ref, wf_ref, bf_ref,                 # constants
                      out_ref,                                  # [N_pad, 4F] accumulator
                      gtab_ref, msg_ref,                        # VMEM scratch
                      *, node_size, cutoff, edges_per_tile, approx_recip):
    F = node_size
    TE = edges_per_tile
    t = pl.program_id(0)
    e0 = t * TE

    # -- init resident accumulator with the residual base [ns | vec] ---------
    @pl.when(t == 0)
    def _init():
        out_ref[...] = tab_ref[:, :4 * F]

    # -- gather ONE packed [1, 8F] row per edge (merged table) ---------------
    def gather_body(j, carry):
        src = esrc_ref[e0 + j]
        gtab_ref[pl.ds(j, 1), :] = tab_ref[pl.ds(src, 1), :]
        return carry

    lax.fori_loop(0, TE, gather_body, 0, unroll=8)

    g = gtab_ref[...]                                           # [TE, 8F]
    gnv = g[:, F:4 * F]                                         # node_vector[src]
    gso = g[:, 4 * F:7 * F]                                     # scalar_out[src]

    # -- per-edge filter: sinc RBF -> linear -> cosine cutoff ----------------
    eg = eg_ref[...]                                            # [TE, 8]
    d = eg[:, 3:4]                                              # [TE, 1]
    if approx_recip:
        rinv = pl.reciprocal(d, approx=True)                    # EUP slot
    else:
        rinv = 1.0 / d
    rbf = jnp.sin(d * freq_ref[...]) * rinv                     # [TE, edge_size]
    fw = jnp.dot(rbf.astype(wf_ref.dtype), wf_ref[...],
                 preferred_element_type=jnp.float32) + bf_ref[...]
    fcut = jnp.where(d < cutoff,
                     0.5 * (jnp.cos(d * (math.pi / cutoff)) + 1.0), 0.0)
    fw = fw * fcut                                              # [TE, 3F]

    filt = fw * gso
    gate_state = filt[:, :F]
    gate_edge = filt[:, F:2 * F]
    msg_scalar = filt[:, 2 * F:]

    mv = []
    for c in range(3):
        dir_c = eg[:, c:c + 1] * rinv                           # [TE, 1]
        mv.append(gnv[:, c * F:(c + 1) * F] * gate_state + gate_edge * dir_c)

    # one lane-dense [TE, 4F] (= 128 lanes) store
    msg_ref[...] = jnp.concatenate([msg_scalar] + mv, axis=1)

    # -- segmented scatter-add (edges pre-sorted by destination) -------------
    # Accumulate a run of same-dst messages in a vreg-carried row; issue one
    # read-modify-write per unique destination per tile.
    def scatter_body(j, carry):
        cur, acc = carry
        dst = edst_ref[e0 + j]
        row = msg_ref[pl.ds(j, 1), :]                           # [1, 4F]
        is_new = dst != cur

        @pl.when(jnp.logical_and(is_new, cur >= 0))
        def _flush():
            out_ref[pl.ds(cur, 1), :] = out_ref[pl.ds(cur, 1), :] + acc

        keep = jnp.where(is_new, 0.0, 1.0).astype(jnp.float32)
        return dst, acc * keep + row

    cur_f, acc_f = lax.fori_loop(
        0, TE, scatter_body,
        (jnp.int32(-1), jnp.zeros((1, 4 * F), jnp.float32)))
    # flush the last run of this tile
    out_ref[pl.ds(cur_f, 1), :] = out_ref[pl.ds(cur_f, 1), :] + acc_f


# ---------------------------------------------------------------------------
# Wrapper
# ---------------------------------------------------------------------------
def painn_message(node_scalar, node_vector, edge, edge_diff, edge_dist, params,
                  *, node_size, edge_size, cutoff, use_bf16=True,
                  node_tile=1024, edge_tile=512):
    """node_scalar [N,F], node_vector [N,3,F], edge [E,2] int32 (dst, src),
       edge_diff [E,3], edge_dist [E]."""
    f32 = jnp.float32
    N, F = node_scalar.shape
    assert F == node_size
    E = edge.shape[0]

    # ---- node-side padding / tiling ----
    TN = min(node_tile, _round_up(N, 8))
    N_pad = _round_up(N, TN)
    ns = jnp.zeros((N_pad, F), f32).at[:N].set(node_scalar.astype(f32))
    nv_flat = jnp.zeros((N_pad, 3 * F), f32).at[:N].set(
        node_vector.astype(f32).reshape(N, 3 * F))

    # ---- edge-side padding / tiling (padded edges: d >= cutoff -> exact 0) --
    TE = min(edge_tile, _round_up(E, 8))
    E_pad = _round_up(E, TE)
    pad_d = 2.0 * float(cutoff)
    esrc = jnp.zeros((E_pad,), jnp.int32).at[:E].set(edge[:, 1].astype(jnp.int32))
    edst = jnp.full((E_pad,), N_pad - 1, jnp.int32).at[:E].set(
        edge[:, 0].astype(jnp.int32))
    # packed edge geometry [diff_x, diff_y, diff_z, dist, 0, 0, 0, 0]
    eg = jnp.zeros((E_pad, 8), f32).at[:, 3].set(pad_d)
    eg = eg.at[:E, :3].set(edge_diff.astype(f32))
    eg = eg.at[:E, 3].set(edge_dist.astype(f32))

    # ---- sort edges by destination -> contiguous runs for segmented scatter -
    order = jnp.argsort(edst)
    esrc = esrc[order]
    edst = edst[order]
    eg = eg[order]

    wdt = jnp.bfloat16 if use_bf16 else f32
    w1 = params["w1"].astype(wdt); b1 = params["b1"].astype(f32).reshape(1, F)
    w2 = params["w2"].astype(wdt); b2 = params["b2"].astype(f32).reshape(1, 3 * F)
    wf = params["wf"].astype(wdt); bf = params["bf"].astype(f32).reshape(1, 3 * F)
    # hoisted sinc frequencies (no per-tile iota)
    freq = ((jnp.arange(edge_size, dtype=f32) + 1.0)
            * (math.pi / float(cutoff))).reshape(1, edge_size)

    # ---- kernel 1: packed node table, node-tiled, megacore-parallel --------
    table = pl.pallas_call(
        node_table_kernel,
        out_shape=jax.ShapeDtypeStruct((N_pad, 8 * F), f32),
        grid=(N_pad // TN,),
        in_specs=[pl.BlockSpec((TN, F), lambda i: (i, 0)),
                  pl.BlockSpec((TN, 3 * F), lambda i: (i, 0)),
                  pl.BlockSpec((F, F), lambda i: (0, 0)),
                  pl.BlockSpec((1, F), lambda i: (0, 0)),
                  pl.BlockSpec((F, 3 * F), lambda i: (0, 0)),
                  pl.BlockSpec((1, 3 * F), lambda i: (0, 0))],
        out_specs=pl.BlockSpec((TN, 8 * F), lambda i: (i, 0)),
        compiler_params=pltpu.CompilerParams(
            dimension_semantics=("parallel",)),
    )(ns, nv_flat, w1, b1, w2, b2)

    # ---- kernel 2: edge messages + segmented scatter-add --------------------
    kern = functools.partial(
        painn_edge_kernel, node_size=F, cutoff=float(cutoff),
        edges_per_tile=TE, approx_recip=use_bf16)

    # scoped-VMEM budget: resident table + accumulator + edge tiles + headroom
    need = 4 * (2 * N_pad * 12 * F + 4 * TE * (12 * F + 128)) + (4 << 20)
    vmem_limit = int(min(max(need, 32 << 20), 96 << 20))

    def _run_edge_kernel(single_buffer_table):
        if single_buffer_table:
            # constant index_map: no need to double-buffer the resident table
            tab_spec = pl.BlockSpec((N_pad, 8 * F), lambda t, s, d: (0, 0),
                                    pipeline_mode=pl.Buffered(1))
        else:
            tab_spec = pl.BlockSpec((N_pad, 8 * F), lambda t, s, d: (0, 0))
        grid_spec = pltpu.PrefetchScalarGridSpec(
            num_scalar_prefetch=2,                               # esrc, edst in SMEM
            grid=(E_pad // TE,),
            in_specs=[
                tab_spec,                                              # node table
                pl.BlockSpec((TE, 8), lambda t, s, d: (t, 0)),         # edge geometry
                pl.BlockSpec((1, edge_size), lambda t, s, d: (0, 0)),  # sinc freqs
                pl.BlockSpec((edge_size, 3 * F), lambda t, s, d: (0, 0)),  # wf
                pl.BlockSpec((1, 3 * F), lambda t, s, d: (0, 0)),      # bf
            ],
            out_specs=pl.BlockSpec((N_pad, 4 * F), lambda t, s, d: (0, 0)),
            scratch_shapes=[pltpu.VMEM((TE, 8 * F), f32),   # gathered packed rows
                            pltpu.VMEM((TE, 4 * F), f32)],  # packed messages
        )
        return pl.pallas_call(
            kern,
            grid_spec=grid_spec,
            out_shape=jax.ShapeDtypeStruct((N_pad, 4 * F), f32),
            compiler_params=pltpu.CompilerParams(
                dimension_semantics=("arbitrary",),       # scatter = reduction axis
                vmem_limit_bytes=vmem_limit),
        )(esrc, edst, table, eg, freq, wf, bf)

    try:
        out_packed = jax.block_until_ready(_run_edge_kernel(True))
    except Exception:
        # this JAX build rejected pipeline_mode=pl.Buffered(1); run double-buffered
        out_packed = _run_edge_kernel(False)

    new_s = out_packed[:N, :F]
    new_v = out_packed[:N, F:].reshape(N, 3, F)
    return new_s, new_v


# ---------------------------------------------------------------------------
# Pure-JAX reference (mirror of the PyTorch forward) for validation
# ---------------------------------------------------------------------------
def reference(node_scalar, node_vector, edge, edge_diff, edge_dist, params,
              *, node_size, edge_size, cutoff):
    n = jnp.arange(edge_size, dtype=jnp.float32) + 1.0
    rbf = jnp.sin(edge_dist[:, None] * n * jnp.pi / cutoff) / edge_dist[:, None]
    fw = rbf @ params["wf"] + params["bf"]
    fcut = jnp.where(edge_dist < cutoff,
                     0.5 * (jnp.cos(jnp.pi * edge_dist / cutoff) + 1.0), 0.0)
    fw = fw * fcut[:, None]
    h = node_scalar @ params["w1"] + params["b1"]
    h = h * jax.nn.sigmoid(h)
    scalar_out = h @ params["w2"] + params["b2"]
    filter_out = fw * scalar_out[edge[:, 1]]
    gs, ge, ms = jnp.split(filter_out, 3, axis=1)
    mv = (node_vector[edge[:, 1]] * gs[:, None, :]
          + ge[:, None, :] * (edge_diff / edge_dist[:, None])[:, :, None])
    rs = jnp.zeros_like(node_scalar).at[edge[:, 0]].add(ms)
    rv = jnp.zeros_like(node_vector).at[edge[:, 0]].add(mv)
    return node_scalar + rs, node_vector + rv


if __name__ == "__main__":
    node_size = 32     # F
    edge_size = 16     # number of sinc basis functions
    cutoff = 3.0
    N, E = 8, 16

    key = jax.random.PRNGKey(0)
    ks = jax.random.split(key, 10)

    node_scalar = jax.random.normal(ks[0], (N, node_size), jnp.float32)
    node_vector = jax.random.normal(ks[1], (N, 3, node_size), jnp.float32)
    edge = jax.random.randint(ks[2], (E, 2), 0, N, jnp.int32)
    edge_diff = jax.random.normal(ks[3], (E, 3), jnp.float32) * 1.2
    edge_dist = jnp.linalg.norm(edge_diff, axis=-1)   # [E], strictly > 0

    params = {
        # nn.Linear(node_size, node_size)       -> w1: [F, F], b1: [1, F]
        "w1": jax.random.normal(ks[4], (node_size, node_size), jnp.float32) * 0.1,
        "b1": jax.random.normal(ks[5], (1, node_size), jnp.float32) * 0.1,
        # nn.Linear(node_size, node_size * 3)   -> w2: [F, 3F], b2: [1, 3F]
        "w2": jax.random.normal(ks[6], (node_size, 3 * node_size), jnp.float32) * 0.1,
        "b2": jax.random.normal(ks[7], (1, 3 * node_size), jnp.float32) * 0.1,
        # nn.Linear(edge_size, node_size * 3)   -> wf: [edge_size, 3F], bf: [1, 3F]
        "wf": jax.random.normal(ks[8], (edge_size, 3 * node_size), jnp.float32) * 0.1,
        "bf": jax.random.normal(ks[9], (1, 3 * node_size), jnp.float32) * 0.1,
    }

    ref_s, ref_v = reference(node_scalar, node_vector, edge, edge_diff,
                             edge_dist, params, node_size=node_size,
                             edge_size=edge_size, cutoff=cutoff)

    # fast path: bf16 matmuls (v6e/v7x MXU native) + approx 1/d on the EUP
    out_s, out_v = painn_message(node_scalar, node_vector, edge, edge_diff,
                                 edge_dist, params, node_size=node_size,
                                 edge_size=edge_size, cutoff=cutoff,
                                 use_bf16=True)
    jax.block_until_ready((out_s, out_v))
    assert jnp.allclose(out_s, ref_s, rtol=3e-2, atol=3e-2), "scalar mismatch (bf16)"
    assert jnp.allclose(out_v, ref_v, rtol=3e-2, atol=3e-2), "vector mismatch (bf16)"

    # exact path: f32 matmuls + exact reciprocal
    out_s32, out_v32 = painn_message(node_scalar, node_vector, edge, edge_diff,
                                     edge_dist, params, node_size=node_size,
                                     edge_size=edge_size, cutoff=cutoff,
                                     use_bf16=False)
    jax.block_until_ready((out_s32, out_v32))
    assert jnp.allclose(out_s32, ref_s, rtol=1e-4, atol=1e-4), "scalar mismatch (f32)"
    assert jnp.allclose(out_v32, ref_v, rtol=1e-4, atol=1e-4), "vector mismatch (f32)"

    # collision-heavy case: every edge targets the same destination node
    edge_c = edge.at[:, 0].set(3)
    ref_cs, ref_cv = reference(node_scalar, node_vector, edge_c, edge_diff,
                               edge_dist, params, node_size=node_size,
                               edge_size=edge_size, cutoff=cutoff)
    out_cs, out_cv = painn_message(node_scalar, node_vector, edge_c, edge_diff,
                                   edge_dist, params, node_size=node_size,
                                   edge_size=edge_size, cutoff=cutoff,
                                   use_bf16=False)
    jax.block_until_ready((out_cs, out_cv))
    assert jnp.allclose(out_cs, ref_cs, rtol=1e-4, atol=1e-4), "scalar mismatch (collision)"
    assert jnp.allclose(out_cv, ref_cv, rtol=1e-4, atol=1e-4), "vector mismatch (collision)"

    print("KERNEL_OK")
</pallas_src>

<mosaic_0001>
module attributes {stable_mosaic.version = 11 : i64} {
  func.func @node_table_kernel(%arg0: i32, %arg1: memref<8x32xf32, #tpu.memory_space<vmem>>, %arg2: memref<8x96xf32, #tpu.memory_space<vmem>>, %arg3: memref<32x32xbf16, #tpu.memory_space<vmem>>, %arg4: memref<1x32xf32, #tpu.memory_space<vmem>>, %arg5: memref<32x96xbf16, #tpu.memory_space<vmem>>, %arg6: memref<1x96xf32, #tpu.memory_space<vmem>>, %arg7: memref<8x256xf32, #tpu.memory_space<vmem>>) attributes {dimension_semantics = [#tpu.dimension_semantics<parallel>], iteration_bounds = array<i64: 1>, scalar_prefetch = 0 : i64, scratch_operands = 0 : i64, tpu.core_type = #tpu.core_type<tc>, window_params = [{transform_indices = @transform_0, window_bounds = array<i64: 8, 32>}, {transform_indices = @transform_1, window_bounds = array<i64: 8, 96>}, {pipeline_mode = #tpu.pipeline_mode<synchronous>, transform_indices = @transform_2, window_bounds = array<i64: 32, 32>}, {pipeline_mode = #tpu.pipeline_mode<synchronous>, transform_indices = @transform_3, window_bounds = array<i64: 1, 32>}, {pipeline_mode = #tpu.pipeline_mode<synchronous>, transform_indices = @transform_4, window_bounds = array<i64: 32, 96>}, {pipeline_mode = #tpu.pipeline_mode<synchronous>, transform_indices = @transform_5, window_bounds = array<i64: 1, 96>}, {transform_indices = @transform_6, window_bounds = array<i64: 8, 256>}]} {
    %c0 = arith.constant 0 : index
    %c0_0 = arith.constant 0 : index
    %0 = vector.load %arg1[%c0, %c0_0] : memref<8x32xf32, #tpu.memory_space<vmem>>, vector<8x32xf32>
    %c0_1 = arith.constant 0 : index
    %c0_2 = arith.constant 0 : index
    %1 = vector.load %arg2[%c0_1, %c0_2] : memref<8x96xf32, #tpu.memory_space<vmem>>, vector<8x96xf32>
    %2 = arith.truncf %0 : vector<8x32xf32> to vector<8x32xbf16>
    %c0_3 = arith.constant 0 : index
    %c0_4 = arith.constant 0 : index
    %3 = vector.load %arg3[%c0_3, %c0_4] : memref<32x32xbf16, #tpu.memory_space<vmem>>, vector<32x32xbf16>
    %cst = arith.constant dense<0.000000e+00> : vector<8x32xf32>
    %4 = tpu.matmul %2, %3, %cst {dimension_numbers = #tpu.dot_dimension_numbers<[1], [0], [0], [1], [0, 0, 1, 1], [], []>} : vector<8x32xbf16>, vector<32x32xbf16>, vector<8x32xf32> -> vector<8x32xf32>
    %c0_5 = arith.constant 0 : index
    %c0_6 = arith.constant 0 : index
    %5 = vector.load %arg4[%c0_5, %c0_6] : memref<1x32xf32, #tpu.memory_space<vmem>>, vector<1x32xf32>
    %6 = vector.broadcast %5 : vector<1x32xf32> to vector<8x32xf32>
    %7 = arith.addf %4, %6 : vector<8x32xf32>
    %8 = arith.negf %7 : vector<8x32xf32>
    %9 = math.exp %8 : vector<8x32xf32>
    %cst_7 = arith.constant 1.000000e+00 : f32
    %10 = vector.broadcast %cst_7 : f32 to vector<8x32xf32>
    %11 = arith.addf %10, %9 : vector<8x32xf32>
    %12 = arith.divf %10, %11 : vector<8x32xf32>
    %13 = arith.mulf %7, %12 : vector<8x32xf32>
    %14 = arith.truncf %13 : vector<8x32xf32> to vector<8x32xbf16>
    %c0_8 = arith.constant 0 : index
    %c0_9 = arith.constant 0 : index
    %15 = vector.load %arg5[%c0_8, %c0_9] : memref<32x96xbf16, #tpu.memory_space<vmem>>, vector<32x96xbf16>
    %cst_10 = arith.constant dense<0.000000e+00> : vector<8x96xf32>
    %16 = tpu.matmul %14, %15, %cst_10 {dimension_numbers = #tpu.dot_dimension_numbers<[1], [0], [0], [1], [0, 0, 1, 1], [], []>} : vector<8x32xbf16>, vector<32x96xbf16>, vector<8x96xf32> -> vector<8x96xf32>
    %c0_11 = arith.constant 0 : index
    %c0_12 = arith.constant 0 : index
    %17 = vector.load %arg6[%c0_11, %c0_12] : memref<1x96xf32, #tpu.memory_space<vmem>>, vector<1x96xf32>
    %18 = vector.broadcast %17 : vector<1x96xf32> to vector<8x96xf32>
    %19 = arith.addf %16, %18 : vector<8x96xf32>
    %cst_13 = arith.constant 0.000000e+00 : f32
    %20 = vector.broadcast %cst_13 : f32 to vector<8x32xf32>
    %21 = tpu.concatenate %0, %1, %19, %20 in 1 : vector<8x32xf32>, vector<8x96xf32>, vector<8x96xf32>, vector<8x32xf32> -> vector<8x256xf32>
    %c0_14 = arith.constant 0 : index
    %c0_15 = arith.constant 0 : index
    %22 = vector.load %arg7[%c0_14, %c0_15] : memref<8x256xf32, #tpu.memory_space<vmem>>, vector<8x256xf32>
    tpu.vector_store %arg7[%c0_14, %c0_15], %21 {strides = array<i32>} : memref<8x256xf32, #tpu.memory_space<vmem>>, vector<8x256xf32>,
    return
  }
  func.func @transform_0(%arg0: i32) -> (i32, i32) {
    %c0_i32 = arith.constant 0 : i32
    %c0_i32_0 = arith.constant 0 : i32
    return %arg0, %c0_i32 : i32, i32
  }
  func.func @transform_1(%arg0: i32) -> (i32, i32) {
    %c0_i32 = arith.constant 0 : i32
    %c0_i32_0 = arith.constant 0 : i32
    return %arg0, %c0_i32 : i32, i32
  }
  func.func @transform_2(%arg0: i32) -> (i32, i32) {
    %c0_i32 = arith.constant 0 : i32
    %c0_i32_0 = arith.constant 0 : i32
    %c0_i32_1 = arith.constant 0 : i32
    return %c0_i32, %c0_i32_0 : i32, i32
  }
  func.func @transform_3(%arg0: i32) -> (i32, i32) {
    %c0_i32 = arith.constant 0 : i32
    %c0_i32_0 = arith.constant 0 : i32
    %c0_i32_1 = arith.constant 0 : i32
    return %c0_i32, %c0_i32_0 : i32, i32
  }
  func.func @transform_4(%arg0: i32) -> (i32, i32) {
    %c0_i32 = arith.constant 0 : i32
    %c0_i32_0 = arith.constant 0 : i32
    %c0_i32_1 = arith.constant 0 : i32
    return %c0_i32, %c0_i32_0 : i32, i32
  }
  func.func @transform_5(%arg0: i32) -> (i32, i32) {
    %c0_i32 = arith.constant 0 : i32
    %c0_i32_0 = arith.constant 0 : i32
    %c0_i32_1 = arith.constant 0 : i32
    return %c0_i32, %c0_i32_0 : i32, i32
  }
  func.func @transform_6(%arg0: i32) -> (i32, i32) {
    %c0_i32 = arith.constant 0 : i32
    %c0_i32_0 = arith.constant 0 : i32
    return %arg0, %c0_i32 : i32, i32
  }
}

</mosaic_0001>

<llo_original>
// kernel: tpu_custom_call.1
$region0: #{tpu_custom_call.1}
  #allocation0 [shape = 'u32[]', space=smem, size = 0x4, offset = 0x4, fixed_abs, tag = 'smem constant byte address 0x4 - core index']
  #allocation1 [shape = 'u32[72,128]{1,0:T(1,128)}', space=vmem, size = 0x9000, scoped, tag = 'internal scratch']
  %s0 = inlined_call_operand.hbm [shape: f32[8,32], index: 0, kind: input, shape index: {}]
  %s1 = inlined_call_operand.hbm [shape: f32[8,96], index: 1, kind: input, shape index: {}]
  %s2 = inlined_call_operand.hbm [shape: bf16[32,32], index: 2, kind: input, shape index: {}]
  %s3 = inlined_call_operand.vmem [shape: f32[1,32], index: 3, kind: input, shape index: {}]
  %s4 = inlined_call_operand.hbm [shape: bf16[32,96], index: 4, kind: input, shape index: {}]
  %s5 = inlined_call_operand.vmem [shape: f32[1,96], index: 5, kind: input, shape index: {}]
  %s6 = inlined_call_operand.hbm [shape: f32[8,256], index: 6, kind: output, shape index: {}]
  %s7 = sld [smem:[#allocation0]]
  $region50: #{tpu_custom_call.1} parent=0
    _
  %s9 = ssub.s32 1, %s7
  %s10 = scalar_select 0, %s9, %s7
  $region1: #{tpu_custom_call.1} parent=0
    #allocation2 [shape = 'u8[4096]{0}', space=vmem, size = 0x1000, scoped, tag = 'input window, operand 0, single buffered']
    #allocation3 [shape = 's32[1]{0}', space=sflag, size = 0x4, scoped, tag = 'scoped memory for tpu_custom_call.1']
    #allocation4 [shape = 's32[1]{0}', space=sflag, size = 0x4, scoped, tag = 'scoped memory for tpu_custom_call.1']
    #allocation5 [shape = 'u8[4096]{0}', space=vmem, size = 0x1000, scoped, tag = 'input window, operand 1, single buffered']
    #allocation6 [shape = 's32[1]{0}', space=sflag, size = 0x4, scoped, tag = 'scoped memory for tpu_custom_call.1']
    #allocation7 [shape = 'u8[8192]{0}', space=vmem, size = 0x2000, scoped, tag = 'input window, operand 2, single buffered']
    #allocation8 [shape = 'u8[8192]{0}', space=vmem, size = 0x2000, scoped, tag = 'input window, operand 4, single buffered']
    #allocation9 [shape = 's32[1]{0}', space=sflag, size = 0x4, scoped, tag = 'scoped memory for tpu_custom_call.1']
    #allocation10 [shape = 'u8[8192]{0}', space=vmem, size = 0x2000, scoped, tag = 'output window, operand 0, single buffered']
    %11 = vsyncpa [#allocation3], 0
    %12 = vsyncpa [#allocation6], 0
    %13 = vsyncpa [#allocation9], 0
    %14 = vsyncpa [#allocation4], 0
    // Predicated region
    $region2: #{tpu_custom_call.1} parent=1 // pred_check
      _
    $region3: #{tpu_custom_call.1} parent=1 // pred_check_branch
      %16 = sbr.rel (0) target = $region5
    $region4: #{tpu_custom_call.1} parent=1 // pred_region
      %18 = vsyncadd [#allocation3], 0
      %s20 = sshll.u32 %s0, 4
      %s21 = int_to_ptr.hbm [resolvable:$true] %s20
      %s22 = sshll.u32 [#allocation2], 4
      %s23 = int_to_ptr.vmem [resolvable:$true] %s22
      %25 = dma.hbm_to_vmem [thread:$0]  %s21, 128, %s23, [#allocation3]
    $region5: #{tpu_custom_call.1} parent=1 // pred_fallthru
      _
    // Predicated region
    $region6: #{tpu_custom_call.1} parent=1 // pred_check
      _
    $region7: #{tpu_custom_call.1} parent=1 // pred_check_branch
      %27 = sbr.rel (0) target = $region9
    $region8: #{tpu_custom_call.1} parent=1 // pred_region
      %29 = vsyncadd [#allocation6], 0
      %s31 = sshll.u32 %s1, 4
      %s32 = int_to_ptr.hbm [resolvable:$true] %s31
      %s33 = sshll.u32 [#allocation5], 4
      %s34 = int_to_ptr.vmem [resolvable:$true] %s33
      %36 = dma.hbm_to_vmem [thread:$0]  %s32, 128, %s34, [#allocation6]
    $region9: #{tpu_custom_call.1} parent=1 // pred_fallthru
      _
    // Predicated region
    $region10: #{tpu_custom_call.1} parent=1 // pred_check
      _
    $region11: #{tpu_custom_call.1} parent=1 // pred_check_branch
      %38 = sbr.rel (0) target = $region13
    $region12: #{tpu_custom_call.1} parent=1 // pred_region
      %40 = vsyncadd [#allocation6], 0
      %s41 = sshll.u32 %s2, 4
      %s42 = int_to_ptr.hbm [resolvable:$true] %s41
      %s43 = sshll.u32 [#allocation7], 4
      %s44 = int_to_ptr.vmem [resolvable:$true] %s43
      %49 = dma.hbm_to_vmem [thread:$0]  %s42, 256, %s44, [#allocation6], 64, 64, 4
    $region13: #{tpu_custom_call.1} parent=1 // pred_fallthru
      _
    // Predicated region
    $region14: #{tpu_custom_call.1} parent=1 // pred_check
      _
    $region15: #{tpu_custom_call.1} parent=1 // pred_check_branch
      %51 = sbr.rel (0) target = $region17
    $region16: #{tpu_custom_call.1} parent=1 // pred_region
      _
    $region17: #{tpu_custom_call.1} parent=1 // pred_fallthru
      _
    // Predicated region
    $region18: #{tpu_custom_call.1} parent=1 // pred_check
      _
    $region19: #{tpu_custom_call.1} parent=1 // pred_check_branch
      %53 = sbr.rel (0) target = $region21
    $region20: #{tpu_custom_call.1} parent=1 // pred_region
      %55 = vsyncadd [#allocation9], 0
      %s56 = sshll.u32 %s4, 4
      %s57 = int_to_ptr.hbm [resolvable:$true] %s56
      %s58 = sshll.u32 [#allocation8], 4
      %s59 = int_to_ptr.vmem [resolvable:$true] %s58
      %64 = dma.hbm_to_vmem [thread:$0]  %s57, 256, %s59, [#allocation9], 64, 64, 4
    $region21: #{tpu_custom_call.1} parent=1 // pred_fallthru
      _
    // Predicated region
    $region22: #{tpu_custom_call.1} parent=1 // pred_check
      _
    $region23: #{tpu_custom_call.1} parent=1 // pred_check_branch
      %66 = sbr.rel (0) target = $region25
    $region24: #{tpu_custom_call.1} parent=1 // pred_region
      _
    $region25: #{tpu_custom_call.1} parent=1 // pred_fallthru
      _
    // Predicated region
    $region26: #{tpu_custom_call.1} parent=1 // pred_check
      _
    $region27: #{tpu_custom_call.1} parent=1 // pred_check_branch
      %68 = sbr.rel (0) target = $region29
    $region28: #{tpu_custom_call.1} parent=1 // pred_region
      %70 = dma.done [#allocation3], 128
    $region29: #{tpu_custom_call.1} parent=1 // pred_fallthru
      _
    // Predicated region
    $region30: #{tpu_custom_call.1} parent=1 // pred_check
      _
    $region31: #{tpu_custom_call.1} parent=1 // pred_check_branch
      %72 = sbr.rel (0) target = $region33
    $region32: #{tpu_custom_call.1} parent=1 // pred_region
      %74 = dma.done [#allocation6], 128
    $region33: #{tpu_custom_call.1} parent=1 // pred_fallthru
      _
    // Predicated region
    $region34: #{tpu_custom_call.1} parent=1 // pred_check
      _
    $region35: #{tpu_custom_call.1} parent=1 // pred_check_branch
      %76 = sbr.rel (0) target = $region37
    $region36: #{tpu_custom_call.1} parent=1 // pred_region
      %78 = dma.done [#allocation6], 256
    $region37: #{tpu_custom_call.1} parent=1 // pred_fallthru
      _
    // Predicated region
    $region38: #{tpu_custom_call.1} parent=1 // pred_check
      _
    $region39: #{tpu_custom_call.1} parent=1 // pred_check_branch
      %80 = sbr.rel (0) target = $region41
    $region40: #{tpu_custom_call.1} parent=1 // pred_region
      %82 = dma.done [#allocation9], 256
    $region41: #{tpu_custom_call.1} parent=1 // pred_fallthru
      _
    %v84 = vld [vmem:[#allocation2] sm:$0xff]
    %v85 = vld [vmem:[#allocation5] sm:$0xff]
    %v86 = vpack.c.bf16 %v84, %v84
    %v87 = vld [vmem:[#allocation7] sm:$0xf]
    %v88 = vld [vmem:[#allocation7 + $0x4] sm:$0xf]
    %v89 = vld [vmem:[#allocation7 + $0x8] sm:$0xf]
    %v90 = vld [vmem:[#allocation7 + $0xc] sm:$0xf]
    %v91 = vld [vmem:[%s3] sm:$0x1]
    %v93 = vperm.slane %v91, 0
    %v99 = vunpack.c.l.b16 %v87
    %v100 = vunpack.c.l.b16 %v88
    %v101 = vunpack.c.l.b16 %v89
    %v102 = vunpack.c.l.b16 %v90
    %v103 = vpack.c.b16 %v100, %v99
    %v104 = vpack.c.b16 %v102, %v101
    %vm107 = vcmask 261120
    %v109 = vsel %vm107, %v86, 0
    %111 = vmatpush.bf16.msra.mxu0 0
    %112 = vmatpush.bf16.msra.mxu0 0
    %113 = vmatpush.bf16.msra.mxu0 0
    %114 = vmatpush.bf16.msra.mxu0 0
    %115 = vmatpush.bf16.msra.mxu0 0
    %116 = vmatpush.bf16.msra.mxu0 0
    %117 = vmatpush.bf16.msra.mxu0 %v104
    %118 = vmatpush.bf16.msra.mxu0 %v103
    %119 = vmatmul.bf16.gmra.mxu0 %v109
    %v120 = vpop.f32.mrf.mxu0
    %v121 = vadd.f32 %v93, %v120
    %v122 = vpop.f32.mrf.mxu0
    %123 = vdwg.mxu0
    %v124 = vxor.u32 %v121, 2147483648
    %v125 = vmul.f32 %v124, 1.442695
    %v126 = vpow.pop %v125
    %v127 = vadd.f32 %v126, 1.0
    %v128 = vrcp.pop %v127
    %v129 = vmul.f32 %v127, %v128
    %v130 = vsub.f32 1.0, %v129
    %v131 = vmul.f32 %v128, %v130
    %v132 = vadd.f32 %v128, %v131
    %vm133 = vweird.f32 %v127
    %vm134 = vweird.f32 %v128
    %vm135 = vmor %vm133, %vm134
    %v136 = vsel %vm135, %v128, %v132
    %v137 = vand.u32 2147483647, %v127
    %vm138 = vcmp.eq.f32.partialorder %v137, 8.507059e+37
    %v139 = vand.u32 %v127, 2147483648
    %v140 = vor.u32 1.1754944e-38, %v139
    %v141 = vsel %vm138, %v140, %v136
    %v142 = vmul.f32 1.0, %v141
    %v143 = vmul.f32 %v121, %v142
    %v144 = vpack.c.bf16 %v143, %v143
    %v145 = vld [vmem:[#allocation8] sm:$0xf]
    %v146 = vld [vmem:[#allocation8 + $0x4] sm:$0xf]
    %v147 = vld [vmem:[#allocation8 + $0x8] sm:$0xf]
    %v148 = vld [vmem:[#allocation8 + $0xc] sm:$0xf]
    %v149 = vld [vmem:[%s5] sm:$0x1]
    %v151 = vperm.slane %v149, 0
    %v157 = vunpack.c.l.b16 %v145
    %v158 = vunpack.c.l.b16 %v146
    %v159 = vunpack.c.l.b16 %v147
    %v160 = vunpack.c.l.b16 %v148
    %v161 = vpack.c.b16 %v158, %v157
    %v162 = vpack.c.b16 %v160, %v159
    %v166 = vsel %vm107, %v144, 0
    %168 = vmatpush.bf16.msra.mxu0 0
    %169 = vmatpush.bf16.msra.mxu0 0
    %170 = vmatpush.bf16.msra.mxu0 0
    %171 = vmatpush.bf16.msra.mxu0 0
    %172 = vmatpush.bf16.msra.mxu0 0
    %173 = vmatpush.bf16.msra.mxu0 0
    %174 = vmatpush.bf16.msra.mxu0 %v162
    %175 = vmatpush.bf16.msra.mxu0 %v161
    %176 = vmatmul.bf16.gmra.mxu0 %v166
    %v177 = vpop.f32.mrf.mxu0
    %v178 = vadd.f32 %v151, %v177
    %v179 = vpop.f32.mrf.mxu0
    %180 = vdwg.mxu0
    %182 = vrot.lane.b32.xlu0 %v85, 32
    %v183 = vpop.permute.xlu0 %182
    %v185 = vsel %vm107, %v84, %v183
    %vm186 = vcmask 785408
    %v187 = vsel %vm186, %v178, 0.0
    %188 = vst [vmem:[#allocation10] sm:$0xff] %v185
    %189 = vst [vmem:[#allocation10 + $0x8] sm:$0xff] %v187
    // Predicated region
    $region42: #{tpu_custom_call.1} parent=1 // pred_check
      _
    $region43: #{tpu_custom_call.1} parent=1 // pred_check_branch
      %191 = sbr.rel (0) target = $region45
    $region44: #{tpu_custom_call.1} parent=1 // pred_region
      %193 = vsyncadd [#allocation4], 0
      %s195 = sshll.u32 [#allocation10], 4
      %s196 = int_to_ptr.vmem [resolvable:$true] %s195
      %s197 = sshll.u32 %s6, 4
      %s198 = int_to_ptr.hbm [resolvable:$true] %s197
      %200 = dma.vmem_to_hbm [thread:$0]  %s196, 256, %s198, [#allocation4]
    $region45: #{tpu_custom_call.1} parent=1 // pred_fallthru
      _
    // Predicated region
    $region46: #{tpu_custom_call.1} parent=1 // pred_check
      _
    $region47: #{tpu_custom_call.1} parent=1 // pred_check_branch
      %202 = sbr.rel (0) target = $region49
    $region48: #{tpu_custom_call.1} parent=1 // pred_region
      %204 = dma.done [#allocation4], 256
    $region49: #{tpu_custom_call.1} parent=1 // pred_fallthru
      _
    %205 = vsyncpa [#allocation3], 1
    %206 = vsyncpa [#allocation6], 1
    %207 = vsyncpa [#allocation9], 1
    %208 = vsyncpa [#allocation4], 1

</llo_original>
